<compile_context>
chip_gen: v7x
topology: tpu7x:2x2x1
jax: 0.10.0
libtpu: 0.0.40
codegen_flags: <defaults>
</compile_context>

<pallas_src>
import functools
import math

import jax
import jax.numpy as jnp
from jax.experimental import pallas as pl
from jax.experimental.pallas import tpu as pltpu


def _rel_pos_bias_kernel(*refs, tq, tk, num_heads, max_distance, bidirectional,
                         log2_heads):
    if log2_heads is None:
        emb_ref, klane_ref, out_ref = refs
    else:
        emb_ref, out_ref = refs
        klane_ref = None

    h = num_heads
    i0 = pl.program_id(0) * tq            # first query index of this tile
    j0 = pl.program_id(1) * tk            # first key index of this tile

    # Range of relative positions (j - i) covered by this tile.
    d_lo = j0 - (i0 + tq - 1)
    d_hi = (j0 + tk - 1) - i0

    lo_thresh = -max_distance if bidirectional else 0
    lo_bucket = 0 if bidirectional else max_distance
    hi_bucket = 2 * max_distance

    hi_sat = d_lo >= max_distance
    lo_sat = jnp.logical_and(d_hi <= lo_thresh, jnp.logical_not(hi_sat))
    in_band = jnp.logical_not(jnp.logical_or(hi_sat, lo_sat))

    out_dtype = out_ref.dtype

    # Fast paths: the whole tile maps to a single bucket -> broadcast one embedding row.
    @pl.when(hi_sat)
    def _():
        out_ref[...] = jnp.broadcast_to(
            emb_ref[hi_bucket, :].astype(out_dtype), (tq, tk * h))

    @pl.when(lo_sat)
    def _():
        out_ref[...] = jnp.broadcast_to(
            emb_ref[lo_bucket, :].astype(out_dtype), (tq, tk * h))

    # General path: tile straddles the relative-position band.
    @pl.when(in_band)
    def _():
        r = jax.lax.broadcasted_iota(jnp.int32, (tq, tk * h), 0)     # row -> query offset
        if klane_ref is None:
            lane = jax.lax.broadcasted_iota(jnp.int32, (tq, tk * h), 1)
            k = jnp.right_shift(lane, log2_heads)                    # lane -> key offset (h = 2^n)
        else:
            k = klane_ref[...]                                       # (1, tk*h), general h
        rel = (j0 - i0) + k - r
        if not bidirectional:
            rel = jnp.maximum(rel, 0)
        idx = jnp.clip(rel, -max_distance, max_distance) + max_distance  # in [0, 2*max_distance]

        acc = jnp.zeros((tq, tk * h), jnp.float32)
        b_start = 0 if bidirectional else max_distance               # causal only uses top half
        for b in range(b_start, 2 * max_distance + 1):
            row = emb_ref[b, :].astype(jnp.float32)                  # (tk*h,) == emb[b, lane % h]
            acc = jnp.where(idx == b, row, acc)
        out_ref[...] = acc.astype(out_dtype)


def _pick_tile(dim, target, multiple):
    """Largest divisor of `dim` <= target that is a multiple of `multiple`
    (falls back to the full dim, which Pallas accepts as a full-extent block)."""
    if dim <= target:
        return dim
    for t in range(target, 0, -1):
        if dim % t == 0 and t % multiple == 0:
            return t
    return dim


def relative_position_bias(emb_weight, seq_len, *, max_distance=128,
                           bidirectional=True, out_dtype=None, tq=None, tk=None):
    """T5-style relative position bias.

    emb_weight: (num_buckets=32, num_heads) table.  Returns (seq_len, seq_len, num_heads)
    in `out_dtype` (defaults to emb_weight.dtype; pass jnp.bfloat16 if the attention
    consumer is bf16 — that halves the HBM writeback, which is this kernel's roofline).

    NOTE: unlike the PyTorch module (which would silently index out of bounds when
    2*max_distance+1 > num_buckets, e.g. the default max_distance=128 with a 32-row table),
    this raises a ValueError for such configurations.
    """
    num_buckets, num_heads = emb_weight.shape
    if 2 * max_distance + 1 > num_buckets:
        raise ValueError(
            f"max_distance={max_distance} needs {2 * max_distance + 1} buckets but the "
            f"embedding table only has {num_buckets} rows (PyTorch would index OOB).")

    s, h = int(seq_len), int(num_heads)
    out_dtype = emb_weight.dtype if out_dtype is None else jnp.dtype(out_dtype)
    itemsize = jnp.dtype(out_dtype).itemsize
    sub = 8 * (4 // itemsize)                       # sublane packing: 8 (f32), 16 (bf16)
    lane_mult = 128 // math.gcd(h, 128)             # tk*h must be a multiple of 128 (or tk == s)
    tk_target = max(lane_mult, max(1, 2048 // h))   # tk*h ~ 2048 lanes (bounds in-band VALU)

    if tq is None:
        tq = _pick_tile(s, 512, sub)                # ~4 MiB f32 / 2 MiB bf16 output blocks
        # v7x megacore guard: avoid a degenerate 1x1 grid for splittable seq_len so both
        # TensorCores ("parallel" axes) get work.
        tk_probe = tk if tk is not None else _pick_tile(s, tk_target, lane_mult)
        if s // tq == 1 and s // tk_probe == 1 and s >= 2 * sub:
            half = _pick_tile(s, s // 2, sub)
            if half != s and s % half == 0 and half % sub == 0:
                tq = half
    if tk is None:
        tk = _pick_tile(s, tk_target, lane_mult)

    if s % tq or s % tk:
        raise ValueError(f"tq={tq}, tk={tk} must divide seq_len={s}")
    if tq != s and tq % sub:
        raise ValueError(f"tq must be a multiple of {sub} for {out_dtype} output "
                         f"(or the full seq_len)")
    if tk != s and (tk * h) % 128:
        raise ValueError("tk*num_heads must be a multiple of 128 (or tk == seq_len)")

    # VMEM budget: 2x double-buffered output block + 2x embedding table block + block-sized
    # in-band temporaries (iota/rel/idx/acc) + slack.  Kept under v7x's 64 MiB physical VMEM.
    out_block = tq * tk * h * itemsize
    f32_block = tq * tk * h * 4
    emb_block = num_buckets * tk * h * emb_weight.dtype.itemsize
    need = 2 * out_block + 2 * emb_block + 6 * f32_block + (2 << 20)
    if need > (64 << 20):
        raise ValueError(
            f"tq={tq}, tk={tk} needs ~{need >> 20} MiB of VMEM; reduce the tile sizes "
            "(v7x TensorCores only have 64 MiB of physical VMEM).")
    vmem_limit = int(max(32 << 20, need))

    # Embedding rows pre-tiled along the lane dim: emb_tiled[b, k*h + j] == emb[b, j].
    # Constant index_map -> the pipeline only DMAs it on the first grid step.
    emb_tiled = jnp.tile(emb_weight, (1, tk))                        # (num_buckets, tk*h)

    pow2_heads = (h & (h - 1)) == 0
    log2_heads = (h.bit_length() - 1) if pow2_heads else None

    args = [emb_tiled]
    in_specs = [pl.BlockSpec((num_buckets, tk * h), lambda qi, kj: (0, 0))]
    if log2_heads is None:
        # Non-power-of-two heads: lane -> key-offset map as a tiny constant input
        # (avoids in-kernel integer division).
        k_of_lane = (jnp.arange(tk * h, dtype=jnp.int32) // h).reshape(1, tk * h)
        args.append(k_of_lane)
        in_specs.append(pl.BlockSpec((1, tk * h), lambda qi, kj: (0, 0)))

    kernel = functools.partial(
        _rel_pos_bias_kernel, tq=tq, tk=tk, num_heads=h,
        max_distance=max_distance, bidirectional=bidirectional, log2_heads=log2_heads)

    out2d = pl.pallas_call(
        kernel,
        out_shape=jax.ShapeDtypeStruct((s, s * h), out_dtype),
        grid=(s // tq, s // tk),
        in_specs=in_specs,
        out_specs=pl.BlockSpec((tq, tk * h), lambda qi, kj: (qi, kj)),
        compiler_params=pltpu.CompilerParams(
            dimension_semantics=("parallel", "parallel"),
            vmem_limit_bytes=vmem_limit),
    )(*args)

    # Free reshape: (S, S*H) and (S, S, H) share the same contiguous layout.
    return out2d.reshape(s, s, h)


def _reference(emb_weight, seq_len, max_distance, bidirectional):
    positions = jnp.arange(seq_len)
    rel = positions[None, :] - positions[:, None]
    if not bidirectional:
        rel = jnp.maximum(rel, 0)
    rel = jnp.clip(rel, -max_distance, max_distance) + max_distance
    return emb_weight[rel]


if __name__ == "__main__":
    num_heads = 8        # config['num_heads']
    num_buckets = 32     # nn.Embedding(32, num_heads)
    max_distance = 15    # keeps indices inside the 32-row table (see NOTE above)

    key = jax.random.PRNGKey(0)
    emb_weight = jax.random.normal(key, (num_buckets, num_heads), dtype=jnp.float32)

    # 1) tiny shape from the module spec (single full-extent tile, general path).
    seq_len = 8
    out = relative_position_bias(emb_weight, seq_len,
                                 max_distance=max_distance, bidirectional=True)
    out = jax.block_until_ready(out)
    ref = _reference(emb_weight, seq_len, max_distance, True)
    assert out.shape == (seq_len, seq_len, num_heads)
    assert out.dtype == emb_weight.dtype
    assert jnp.allclose(out, ref, atol=1e-6, rtol=1e-6)

    # 2) default tile picker (exercises larger blocks + megacore split guard), f32 output,
    #    both bidirectional and causal clamping.
    seq_len2 = 256
    for bidir in (True, False):
        out2 = relative_position_bias(emb_weight, seq_len2, max_distance=max_distance,
                                      bidirectional=bidir)
        out2 = jax.block_until_ready(out2)
        ref2 = _reference(emb_weight, seq_len2, max_distance, bidir)
        assert out2.shape == (seq_len2, seq_len2, num_heads)
        assert jnp.allclose(out2, ref2, atol=1e-6, rtol=1e-6)

    # 3) bf16 consumer dtype (halves HBM writeback) with explicit small tiles: exercises the
    #    saturated-tile broadcast fast paths, lane-dense stores and the bf16 casts.
    for bidir in (True, False):
        out3 = relative_position_bias(emb_weight, seq_len2, max_distance=max_distance,
                                      bidirectional=bidir, out_dtype=jnp.bfloat16,
                                      tq=64, tk=32)
        out3 = jax.block_until_ready(out3)
        ref3 = _reference(emb_weight, seq_len2, max_distance, bidir).astype(jnp.bfloat16)
        assert out3.dtype == jnp.bfloat16
        assert jnp.allclose(out3.astype(jnp.float32), ref3.astype(jnp.float32),
                            atol=1e-2, rtol=1e-2)

    print("KERNEL_OK")
</pallas_src>

<mosaic_0001>
module attributes {stable_mosaic.version = 11 : i64} {
  func.func @_rel_pos_bias_kernel(%arg0: i32, %arg1: i32, %arg2: memref<32x64xf32, #tpu.memory_space<vmem>>, %arg3: memref<8x64xf32, #tpu.memory_space<vmem>>) attributes {dimension_semantics = [#tpu.dimension_semantics<parallel>, #tpu.dimension_semantics<parallel>], iteration_bounds = array<i64: 1, 1>, scalar_prefetch = 0 : i64, scratch_operands = 0 : i64, tpu.core_type = #tpu.core_type<tc>, window_params = [{pipeline_mode = #tpu.pipeline_mode<synchronous>, transform_indices = @transform_0, window_bounds = array<i64: 32, 64>}, {transform_indices = @transform_1, window_bounds = array<i64: 8, 64>}]} {
    %c8_i32 = arith.constant 8 : i32
    %0 = arith.muli %arg0, %c8_i32 : i32
    %c8_i32_0 = arith.constant 8 : i32
    %1 = arith.muli %arg1, %c8_i32_0 : i32
    %c8_i32_1 = arith.constant 8 : i32
    %2 = arith.addi %0, %c8_i32_1 : i32
    %c1_i32 = arith.constant 1 : i32
    %3 = arith.subi %2, %c1_i32 : i32
    %4 = arith.subi %1, %3 : i32
    %c8_i32_2 = arith.constant 8 : i32
    %5 = arith.addi %1, %c8_i32_2 : i32
    %c1_i32_3 = arith.constant 1 : i32
    %6 = arith.subi %5, %c1_i32_3 : i32
    %7 = arith.subi %6, %0 : i32
    %c15_i32 = arith.constant 15 : i32
    %8 = arith.cmpi sge, %4, %c15_i32 : i32
    %c-15_i32 = arith.constant -15 : i32
    %9 = arith.cmpi sle, %7, %c-15_i32 : i32
    %true = arith.constant true
    %10 = arith.xori %8, %true : i1
    %11 = arith.andi %9, %10 : i1
    %12 = arith.ori %8, %11 : i1
    %true_4 = arith.constant true
    %13 = arith.xori %12, %true_4 : i1
    %14 = arith.extui %8 : i1 to i32
    %c0_i32 = arith.constant 0 : i32
    %15 = arith.cmpi ne, %14, %c0_i32 : i32
    scf.if %15 {
      %c30 = arith.constant 30 : index
      %c0 = arith.constant 0 : index
      %20 = vector.load %arg2[%c30, %c0] : memref<32x64xf32, #tpu.memory_space<vmem>>, vector<1x64xf32>
      %21 = vector.shape_cast %20 : vector<1x64xf32> to vector<64xf32>
      %22 = vector.shape_cast %21 : vector<64xf32> to vector<1x64xf32>
      %23 = vector.broadcast %22 : vector<1x64xf32> to vector<8x64xf32>
      %c0_7 = arith.constant 0 : index
      %c0_8 = arith.constant 0 : index
      %24 = vector.load %arg3[%c0_7, %c0_8] : memref<8x64xf32, #tpu.memory_space<vmem>>, vector<8x64xf32>
      tpu.vector_store %arg3[%c0_7, %c0_8], %23 {strides = array<i32>} : memref<8x64xf32, #tpu.memory_space<vmem>>, vector<8x64xf32>,
    } else {
    }
    %16 = arith.extui %11 : i1 to i32
    %c0_i32_5 = arith.constant 0 : i32
    %17 = arith.cmpi ne, %16, %c0_i32_5 : i32
    scf.if %17 {
      %c0 = arith.constant 0 : index
      %c0_7 = arith.constant 0 : index
      %20 = vector.load %arg2[%c0, %c0_7] : memref<32x64xf32, #tpu.memory_space<vmem>>, vector<1x64xf32>
      %21 = vector.shape_cast %20 : vector<1x64xf32> to vector<64xf32>
      %22 = vector.shape_cast %21 : vector<64xf32> to vector<1x64xf32>
      %23 = vector.broadcast %22 : vector<1x64xf32> to vector<8x64xf32>
      %c0_8 = arith.constant 0 : index
      %c0_9 = arith.constant 0 : index
      %24 = vector.load %arg3[%c0_8, %c0_9] : memref<8x64xf32, #tpu.memory_space<vmem>>, vector<8x64xf32>
      tpu.vector_store %arg3[%c0_8, %c0_9], %23 {strides = array<i32>} : memref<8x64xf32, #tpu.memory_space<vmem>>, vector<8x64xf32>,
    } else {
    }
    %18 = arith.extui %13 : i1 to i32
    %c0_i32_6 = arith.constant 0 : i32
    %19 = arith.cmpi ne, %18, %c0_i32_6 : i32
    scf.if %19 {
      %20 = tpu.iota {dimensions = array<i32: 0>} : vector<8x64xi32>
      %21 = tpu.iota {dimensions = array<i32: 1>} : vector<8x64xi32>
      %c3_i32 = arith.constant 3 : i32
      %22 = vector.broadcast %c3_i32 : i32 to vector<8x64xi32>
      %23 = arith.shrsi %21, %22 : vector<8x64xi32>
      %24 = arith.subi %1, %0 : i32
      %25 = vector.broadcast %24 : i32 to vector<8x64xi32>
      %26 = arith.addi %25, %23 : vector<8x64xi32>
      %27 = arith.subi %26, %20 : vector<8x64xi32>
      %c-15_i32_7 = arith.constant -15 : i32
      %c15_i32_8 = arith.constant 15 : i32
      %28 = vector.broadcast %c-15_i32_7 : i32 to vector<8x64xi32>
      %29 = arith.maxsi %28, %27 : vector<8x64xi32>
      %30 = vector.broadcast %c15_i32_8 : i32 to vector<8x64xi32>
      %31 = arith.minsi %30, %29 : vector<8x64xi32>
      %c15_i32_9 = arith.constant 15 : i32
      %32 = vector.broadcast %c15_i32_9 : i32 to vector<8x64xi32>
      %33 = arith.addi %31, %32 : vector<8x64xi32>
      %cst = arith.constant 0.000000e+00 : f32
      %34 = vector.broadcast %cst : f32 to vector<8x64xf32>
      %c0 = arith.constant 0 : index
      %c0_10 = arith.constant 0 : index
      %35 = vector.load %arg2[%c0, %c0_10] : memref<32x64xf32, #tpu.memory_space<vmem>>, vector<1x64xf32>
      %36 = vector.shape_cast %35 : vector<1x64xf32> to vector<64xf32>
      %c0_i32_11 = arith.constant 0 : i32
      %37 = vector.broadcast %c0_i32_11 : i32 to vector<8x64xi32>
      %38 = arith.cmpi eq, %33, %37 : vector<8x64xi32>
      %39 = vector.shape_cast %36 : vector<64xf32> to vector<1x64xf32>
      %40 = vector.broadcast %39 : vector<1x64xf32> to vector<8x64xf32>
      %41 = arith.select %38, %40, %34 : vector<8x64xi1>, vector<8x64xf32>
      %c1 = arith.constant 1 : index
      %c0_12 = arith.constant 0 : index
      %42 = vector.load %arg2[%c1, %c0_12] : memref<32x64xf32, #tpu.memory_space<vmem>>, vector<1x64xf32>
      %43 = vector.shape_cast %42 : vector<1x64xf32> to vector<64xf32>
      %c1_i32_13 = arith.constant 1 : i32
      %44 = vector.broadcast %c1_i32_13 : i32 to vector<8x64xi32>
      %45 = arith.cmpi eq, %33, %44 : vector<8x64xi32>
      %46 = vector.shape_cast %43 : vector<64xf32> to vector<1x64xf32>
      %47 = vector.broadcast %46 : vector<1x64xf32> to vector<8x64xf32>
      %48 = arith.select %45, %47, %41 : vector<8x64xi1>, vector<8x64xf32>
      %c2 = arith.constant 2 : index
      %c0_14 = arith.constant 0 : index
      %49 = vector.load %arg2[%c2, %c0_14] : memref<32x64xf32, #tpu.memory_space<vmem>>, vector<1x64xf32>
      %50 = vector.shape_cast %49 : vector<1x64xf32> to vector<64xf32>
      %c2_i32 = arith.constant 2 : i32
      %51 = vector.broadcast %c2_i32 : i32 to vector<8x64xi32>
      %52 = arith.cmpi eq, %33, %51 : vector<8x64xi32>
      %53 = vector.shape_cast %50 : vector<64xf32> to vector<1x64xf32>
      %54 = vector.broadcast %53 : vector<1x64xf32> to vector<8x64xf32>
      %55 = arith.select %52, %54, %48 : vector<8x64xi1>, vector<8x64xf32>
      %c3 = arith.constant 3 : index
      %c0_15 = arith.constant 0 : index
      %56 = vector.load %arg2[%c3, %c0_15] : memref<32x64xf32, #tpu.memory_space<vmem>>, vector<1x64xf32>
      %57 = vector.shape_cast %56 : vector<1x64xf32> to vector<64xf32>
      %c3_i32_16 = arith.constant 3 : i32
      %58 = vector.broadcast %c3_i32_16 : i32 to vector<8x64xi32>
      %59 = arith.cmpi eq, %33, %58 : vector<8x64xi32>
      %60 = vector.shape_cast %57 : vector<64xf32> to vector<1x64xf32>
      %61 = vector.broadcast %60 : vector<1x64xf32> to vector<8x64xf32>
      %62 = arith.select %59, %61, %55 : vector<8x64xi1>, vector<8x64xf32>
      %c4 = arith.constant 4 : index
      %c0_17 = arith.constant 0 : index
      %63 = vector.load %arg2[%c4, %c0_17] : memref<32x64xf32, #tpu.memory_space<vmem>>, vector<1x64xf32>
      %64 = vector.shape_cast %63 : vector<1x64xf32> to vector<64xf32>
      %c4_i32 = arith.constant 4 : i32
      %65 = vector.broadcast %c4_i32 : i32 to vector<8x64xi32>
      %66 = arith.cmpi eq, %33, %65 : vector<8x64xi32>
      %67 = vector.shape_cast %64 : vector<64xf32> to vector<1x64xf32>
      %68 = vector.broadcast %67 : vector<1x64xf32> to vector<8x64xf32>
      %69 = arith.select %66, %68, %62 : vector<8x64xi1>, vector<8x64xf32>
      %c5 = arith.constant 5 : index
      %c0_18 = arith.constant 0 : index
      %70 = vector.load %arg2[%c5, %c0_18] : memref<32x64xf32, #tpu.memory_space<vmem>>, vector<1x64xf32>
      %71 = vector.shape_cast %70 : vector<1x64xf32> to vector<64xf32>
      %c5_i32 = arith.constant 5 : i32
      %72 = vector.broadcast %c5_i32 : i32 to vector<8x64xi32>
      %73 = arith.cmpi eq, %33, %72 : vector<8x64xi32>
      %74 = vector.shape_cast %71 : vector<64xf32> to vector<1x64xf32>
      %75 = vector.broadcast %74 : vector<1x64xf32> to vector<8x64xf32>
      %76 = arith.select %73, %75, %69 : vector<8x64xi1>, vector<8x64xf32>
      %c6 = arith.constant 6 : index
      %c0_19 = arith.constant 0 : index
      %77 = vector.load %arg2[%c6, %c0_19] : memref<32x64xf32, #tpu.memory_space<vmem>>, vector<1x64xf32>
      %78 = vector.shape_cast %77 : vector<1x64xf32> to vector<64xf32>
      %c6_i32 = arith.constant 6 : i32
      %79 = vector.broadcast %c6_i32 : i32 to vector<8x64xi32>
      %80 = arith.cmpi eq, %33, %79 : vector<8x64xi32>
      %81 = vector.shape_cast %78 : vector<64xf32> to vector<1x64xf32>
      %82 = vector.broadcast %81 : vector<1x64xf32> to vector<8x64xf32>
      %83 = arith.select %80, %82, %76 : vector<8x64xi1>, vector<8x64xf32>
      %c7 = arith.constant 7 : index
      %c0_20 = arith.constant 0 : index
      %84 = vector.load %arg2[%c7, %c0_20] : memref<32x64xf32, #tpu.memory_space<vmem>>, vector<1x64xf32>
      %85 = vector.shape_cast %84 : vector<1x64xf32> to vector<64xf32>
      %c7_i32 = arith.constant 7 : i32
      %86 = vector.broadcast %c7_i32 : i32 to vector<8x64xi32>
      %87 = arith.cmpi eq, %33, %86 : vector<8x64xi32>
      %88 = vector.shape_cast %85 : vector<64xf32> to vector<1x64xf32>
      %89 = vector.broadcast %88 : vector<1x64xf32> to vector<8x64xf32>
      %90 = arith.select %87, %89, %83 : vector<8x64xi1>, vector<8x64xf32>
      %c8 = arith.constant 8 : index
      %c0_21 = arith.constant 0 : index
      %91 = vector.load %arg2[%c8, %c0_21] : memref<32x64xf32, #tpu.memory_space<vmem>>, vector<1x64xf32>
      %92 = vector.shape_cast %91 : vector<1x64xf32> to vector<64xf32>
      %c8_i32_22 = arith.constant 8 : i32
      %93 = vector.broadcast %c8_i32_22 : i32 to vector<8x64xi32>
      %94 = arith.cmpi eq, %33, %93 : vector<8x64xi32>
      %95 = vector.shape_cast %92 : vector<64xf32> to vector<1x64xf32>
      %96 = vector.broadcast %95 : vector<1x64xf32> to vector<8x64xf32>
      %97 = arith.select %94, %96, %90 : vector<8x64xi1>, vector<8x64xf32>
      %c9 = arith.constant 9 : index
      %c0_23 = arith.constant 0 : index
      %98 = vector.load %arg2[%c9, %c0_23] : memref<32x64xf32, #tpu.memory_space<vmem>>, vector<1x64xf32>
      %99 = vector.shape_cast %98 : vector<1x64xf32> to vector<64xf32>
      %c9_i32 = arith.constant 9 : i32
      %100 = vector.broadcast %c9_i32 : i32 to vector<8x64xi32>
      %101 = arith.cmpi eq, %33, %100 : vector<8x64xi32>
      %102 = vector.shape_cast %99 : vector<64xf32> to vector<1x64xf32>
      %103 = vector.broadcast %102 : vector<1x64xf32> to vector<8x64xf32>
      %104 = arith.select %101, %103, %97 : vector<8x64xi1>, vector<8x64xf32>
      %c10 = arith.constant 10 : index
      %c0_24 = arith.constant 0 : index
      %105 = vector.load %arg2[%c10, %c0_24] : memref<32x64xf32, #tpu.memory_space<vmem>>, vector<1x64xf32>
      %106 = vector.shape_cast %105 : vector<1x64xf32> to vector<64xf32>
      %c10_i32 = arith.constant 10 : i32
      %107 = vector.broadcast %c10_i32 : i32 to vector<8x64xi32>
      %108 = arith.cmpi eq, %33, %107 : vector<8x64xi32>
      %109 = vector.shape_cast %106 : vector<64xf32> to vector<1x64xf32>
      %110 = vector.broadcast %109 : vector<1x64xf32> to vector<8x64xf32>
      %111 = arith.select %108, %110, %104 : vector<8x64xi1>, vector<8x64xf32>
      %c11 = arith.constant 11 : index
      %c0_25 = arith.constant 0 : index
      %112 = vector.load %arg2[%c11, %c0_25] : memref<32x64xf32, #tpu.memory_space<vmem>>, vector<1x64xf32>
      %113 = vector.shape_cast %112 : vector<1x64xf32> to vector<64xf32>
      %c11_i32 = arith.constant 11 : i32
      %114 = vector.broadcast %c11_i32 : i32 to vector<8x64xi32>
      %115 = arith.cmpi eq, %33, %114 : vector<8x64xi32>
      %116 = vector.shape_cast %113 : vector<64xf32> to vector<1x64xf32>
      %117 = vector.broadcast %116 : vector<1x64xf32> to vector<8x64xf32>
      %118 = arith.select %115, %117, %111 : vector<8x64xi1>, vector<8x64xf32>
      %c12 = arith.constant 12 : index
      %c0_26 = arith.constant 0 : index
      %119 = vector.load %arg2[%c12, %c0_26] : memref<32x64xf32, #tpu.memory_space<vmem>>, vector<1x64xf32>
      %120 = vector.shape_cast %119 : vector<1x64xf32> to vector<64xf32>
      %c12_i32 = arith.constant 12 : i32
      %121 = vector.broadcast %c12_i32 : i32 to vector<8x64xi32>
      %122 = arith.cmpi eq, %33, %121 : vector<8x64xi32>
      %123 = vector.shape_cast %120 : vector<64xf32> to vector<1x64xf32>
      %124 = vector.broadcast %123 : vector<1x64xf32> to vector<8x64xf32>
      %125 = arith.select %122, %124, %118 : vector<8x64xi1>, vector<8x64xf32>
      %c13 = arith.constant 13 : index
      %c0_27 = arith.constant 0 : index
      %126 = vector.load %arg2[%c13, %c0_27] : memref<32x64xf32, #tpu.memory_space<vmem>>, vector<1x64xf32>
      %127 = vector.shape_cast %126 : vector<1x64xf32> to vector<64xf32>
      %c13_i32 = arith.constant 13 : i32
      %128 = vector.broadcast %c13_i32 : i32 to vector<8x64xi32>
      %129 = arith.cmpi eq, %33, %128 : vector<8x64xi32>
      %130 = vector.shape_cast %127 : vector<64xf32> to vector<1x64xf32>
      %131 = vector.broadcast %130 : vector<1x64xf32> to vector<8x64xf32>
      %132 = arith.select %129, %131, %125 : vector<8x64xi1>, vector<8x64xf32>
      %c14 = arith.constant 14 : index
      %c0_28 = arith.constant 0 : index
      %133 = vector.load %arg2[%c14, %c0_28] : memref<32x64xf32, #tpu.memory_space<vmem>>, vector<1x64xf32>
      %134 = vector.shape_cast %133 : vector<1x64xf32> to vector<64xf32>
      %c14_i32 = arith.constant 14 : i32
      %135 = vector.broadcast %c14_i32 : i32 to vector<8x64xi32>
      %136 = arith.cmpi eq, %33, %135 : vector<8x64xi32>
      %137 = vector.shape_cast %134 : vector<64xf32> to vector<1x64xf32>
      %138 = vector.broadcast %137 : vector<1x64xf32> to vector<8x64xf32>
      %139 = arith.select %136, %138, %132 : vector<8x64xi1>, vector<8x64xf32>
      %c15 = arith.constant 15 : index
      %c0_29 = arith.constant 0 : index
      %140 = vector.load %arg2[%c15, %c0_29] : memref<32x64xf32, #tpu.memory_space<vmem>>, vector<1x64xf32>
      %141 = vector.shape_cast %140 : vector<1x64xf32> to vector<64xf32>
      %c15_i32_30 = arith.constant 15 : i32
      %142 = vector.broadcast %c15_i32_30 : i32 to vector<8x64xi32>
      %143 = arith.cmpi eq, %33, %142 : vector<8x64xi32>
      %144 = vector.shape_cast %141 : vector<64xf32> to vector<1x64xf32>
      %145 = vector.broadcast %144 : vector<1x64xf32> to vector<8x64xf32>
      %146 = arith.select %143, %145, %139 : vector<8x64xi1>, vector<8x64xf32>
      %c16 = arith.constant 16 : index
      %c0_31 = arith.constant 0 : index
      %147 = vector.load %arg2[%c16, %c0_31] : memref<32x64xf32, #tpu.memory_space<vmem>>, vector<1x64xf32>
      %148 = vector.shape_cast %147 : vector<1x64xf32> to vector<64xf32>
      %c16_i32 = arith.constant 16 : i32
      %149 = vector.broadcast %c16_i32 : i32 to vector<8x64xi32>
      %150 = arith.cmpi eq, %33, %149 : vector<8x64xi32>
      %151 = vector.shape_cast %148 : vector<64xf32> to vector<1x64xf32>
      %152 = vector.broadcast %151 : vector<1x64xf32> to vector<8x64xf32>
      %153 = arith.select %150, %152, %146 : vector<8x64xi1>, vector<8x64xf32>
      %c17 = arith.constant 17 : index
      %c0_32 = arith.constant 0 : index
      %154 = vector.load %arg2[%c17, %c0_32] : memref<32x64xf32, #tpu.memory_space<vmem>>, vector<1x64xf32>
      %155 = vector.shape_cast %154 : vector<1x64xf32> to vector<64xf32>
      %c17_i32 = arith.constant 17 : i32
      %156 = vector.broadcast %c17_i32 : i32 to vector<8x64xi32>
      %157 = arith.cmpi eq, %33, %156 : vector<8x64xi32>
      %158 = vector.shape_cast %155 : vector<64xf32> to vector<1x64xf32>
      %159 = vector.broadcast %158 : vector<1x64xf32> to vector<8x64xf32>
      %160 = arith.select %157, %159, %153 : vector<8x64xi1>, vector<8x64xf32>
      %c18 = arith.constant 18 : index
      %c0_33 = arith.constant 0 : index
      %161 = vector.load %arg2[%c18, %c0_33] : memref<32x64xf32, #tpu.memory_space<vmem>>, vector<1x64xf32>
      %162 = vector.shape_cast %161 : vector<1x64xf32> to vector<64xf32>
      %c18_i32 = arith.constant 18 : i32
      %163 = vector.broadcast %c18_i32 : i32 to vector<8x64xi32>
      %164 = arith.cmpi eq, %33, %163 : vector<8x64xi32>
      %165 = vector.shape_cast %162 : vector<64xf32> to vector<1x64xf32>
      %166 = vector.broadcast %165 : vector<1x64xf32> to vector<8x64xf32>
      %167 = arith.select %164, %166, %160 : vector<8x64xi1>, vector<8x64xf32>
      %c19 = arith.constant 19 : index
      %c0_34 = arith.constant 0 : index
      %168 = vector.load %arg2[%c19, %c0_34] : memref<32x64xf32, #tpu.memory_space<vmem>>, vector<1x64xf32>
      %169 = vector.shape_cast %168 : vector<1x64xf32> to vector<64xf32>
      %c19_i32 = arith.constant 19 : i32
      %170 = vector.broadcast %c19_i32 : i32 to vector<8x64xi32>
      %171 = arith.cmpi eq, %33, %170 : vector<8x64xi32>
      %172 = vector.shape_cast %169 : vector<64xf32> to vector<1x64xf32>
      %173 = vector.broadcast %172 : vector<1x64xf32> to vector<8x64xf32>
      %174 = arith.select %171, %173, %167 : vector<8x64xi1>, vector<8x64xf32>
      %c20 = arith.constant 20 : index
      %c0_35 = arith.constant 0 : index
      %175 = vector.load %arg2[%c20, %c0_35] : memref<32x64xf32, #tpu.memory_space<vmem>>, vector<1x64xf32>
      %176 = vector.shape_cast %175 : vector<1x64xf32> to vector<64xf32>
      %c20_i32 = arith.constant 20 : i32
      %177 = vector.broadcast %c20_i32 : i32 to vector<8x64xi32>
      %178 = arith.cmpi eq, %33, %177 : vector<8x64xi32>
      %179 = vector.shape_cast %176 : vector<64xf32> to vector<1x64xf32>
      %180 = vector.broadcast %179 : vector<1x64xf32> to vector<8x64xf32>
      %181 = arith.select %178, %180, %174 : vector<8x64xi1>, vector<8x64xf32>
      %c21 = arith.constant 21 : index
      %c0_36 = arith.constant 0 : index
      %182 = vector.load %arg2[%c21, %c0_36] : memref<32x64xf32, #tpu.memory_space<vmem>>, vector<1x64xf32>
      %183 = vector.shape_cast %182 : vector<1x64xf32> to vector<64xf32>
      %c21_i32 = arith.constant 21 : i32
      %184 = vector.broadcast %c21_i32 : i32 to vector<8x64xi32>
      %185 = arith.cmpi eq, %33, %184 : vector<8x64xi32>
      %186 = vector.shape_cast %183 : vector<64xf32> to vector<1x64xf32>
      %187 = vector.broadcast %186 : vector<1x64xf32> to vector<8x64xf32>
      %188 = arith.select %185, %187, %181 : vector<8x64xi1>, vector<8x64xf32>
      %c22 = arith.constant 22 : index
      %c0_37 = arith.constant 0 : index
      %189 = vector.load %arg2[%c22, %c0_37] : memref<32x64xf32, #tpu.memory_space<vmem>>, vector<1x64xf32>
      %190 = vector.shape_cast %189 : vector<1x64xf32> to vector<64xf32>
      %c22_i32 = arith.constant 22 : i32
      %191 = vector.broadcast %c22_i32 : i32 to vector<8x64xi32>
      %192 = arith.cmpi eq, %33, %191 : vector<8x64xi32>
      %193 = vector.shape_cast %190 : vector<64xf32> to vector<1x64xf32>
      %194 = vector.broadcast %193 : vector<1x64xf32> to vector<8x64xf32>
      %195 = arith.select %192, %194, %188 : vector<8x64xi1>, vector<8x64xf32>
      %c23 = arith.constant 23 : index
      %c0_38 = arith.constant 0 : index
      %196 = vector.load %arg2[%c23, %c0_38] : memref<32x64xf32, #tpu.memory_space<vmem>>, vector<1x64xf32>
      %197 = vector.shape_cast %196 : vector<1x64xf32> to vector<64xf32>
      %c23_i32 = arith.constant 23 : i32
      %198 = vector.broadcast %c23_i32 : i32 to vector<8x64xi32>
      %199 = arith.cmpi eq, %33, %198 : vector<8x64xi32>
      %200 = vector.shape_cast %197 : vector<64xf32> to vector<1x64xf32>
      %201 = vector.broadcast %200 : vector<1x64xf32> to vector<8x64xf32>
      %202 = arith.select %199, %201, %195 : vector<8x64xi1>, vector<8x64xf32>
      %c24 = arith.constant 24 : index
      %c0_39 = arith.constant 0 : index
      %203 = vector.load %arg2[%c24, %c0_39] : memref<32x64xf32, #tpu.memory_space<vmem>>, vector<1x64xf32>
      %204 = vector.shape_cast %203 : vector<1x64xf32> to vector<64xf32>
      %c24_i32 = arith.constant 24 : i32
      %205 = vector.broadcast %c24_i32 : i32 to vector<8x64xi32>
      %206 = arith.cmpi eq, %33, %205 : vector<8x64xi32>
      %207 = vector.shape_cast %204 : vector<64xf32> to vector<1x64xf32>
      %208 = vector.broadcast %207 : vector<1x64xf32> to vector<8x64xf32>
      %209 = arith.select %206, %208, %202 : vector<8x64xi1>, vector<8x64xf32>
      %c25 = arith.constant 25 : index
      %c0_40 = arith.constant 0 : index
      %210 = vector.load %arg2[%c25, %c0_40] : memref<32x64xf32, #tpu.memory_space<vmem>>, vector<1x64xf32>
      %211 = vector.shape_cast %210 : vector<1x64xf32> to vector<64xf32>
      %c25_i32 = arith.constant 25 : i32
      %212 = vector.broadcast %c25_i32 : i32 to vector<8x64xi32>
      %213 = arith.cmpi eq, %33, %212 : vector<8x64xi32>
      %214 = vector.shape_cast %211 : vector<64xf32> to vector<1x64xf32>
      %215 = vector.broadcast %214 : vector<1x64xf32> to vector<8x64xf32>
      %216 = arith.select %213, %215, %209 : vector<8x64xi1>, vector<8x64xf32>
      %c26 = arith.constant 26 : index
      %c0_41 = arith.constant 0 : index
      %217 = vector.load %arg2[%c26, %c0_41] : memref<32x64xf32, #tpu.memory_space<vmem>>, vector<1x64xf32>
      %218 = vector.shape_cast %217 : vector<1x64xf32> to vector<64xf32>
      %c26_i32 = arith.constant 26 : i32
      %219 = vector.broadcast %c26_i32 : i32 to vector<8x64xi32>
      %220 = arith.cmpi eq, %33, %219 : vector<8x64xi32>
      %221 = vector.shape_cast %218 : vector<64xf32> to vector<1x64xf32>
      %222 = vector.broadcast %221 : vector<1x64xf32> to vector<8x64xf32>
      %223 = arith.select %220, %222, %216 : vector<8x64xi1>, vector<8x64xf32>
      %c27 = arith.constant 27 : index
      %c0_42 = arith.constant 0 : index
      %224 = vector.load %arg2[%c27, %c0_42] : memref<32x64xf32, #tpu.memory_space<vmem>>, vector<1x64xf32>
      %225 = vector.shape_cast %224 : vector<1x64xf32> to vector<64xf32>
      %c27_i32 = arith.constant 27 : i32
      %226 = vector.broadcast %c27_i32 : i32 to vector<8x64xi32>
      %227 = arith.cmpi eq, %33, %226 : vector<8x64xi32>
      %228 = vector.shape_cast %225 : vector<64xf32> to vector<1x64xf32>
      %229 = vector.broadcast %228 : vector<1x64xf32> to vector<8x64xf32>
      %230 = arith.select %227, %229, %223 : vector<8x64xi1>, vector<8x64xf32>
      %c28 = arith.constant 28 : index
      %c0_43 = arith.constant 0 : index
      %231 = vector.load %arg2[%c28, %c0_43] : memref<32x64xf32, #tpu.memory_space<vmem>>, vector<1x64xf32>
      %232 = vector.shape_cast %231 : vector<1x64xf32> to vector<64xf32>
      %c28_i32 = arith.constant 28 : i32
      %233 = vector.broadcast %c28_i32 : i32 to vector<8x64xi32>
      %234 = arith.cmpi eq, %33, %233 : vector<8x64xi32>
      %235 = vector.shape_cast %232 : vector<64xf32> to vector<1x64xf32>
      %236 = vector.broadcast %235 : vector<1x64xf32> to vector<8x64xf32>
      %237 = arith.select %234, %236, %230 : vector<8x64xi1>, vector<8x64xf32>
      %c29 = arith.constant 29 : index
      %c0_44 = arith.constant 0 : index
      %238 = vector.load %arg2[%c29, %c0_44] : memref<32x64xf32, #tpu.memory_space<vmem>>, vector<1x64xf32>
      %239 = vector.shape_cast %238 : vector<1x64xf32> to vector<64xf32>
      %c29_i32 = arith.constant 29 : i32
      %240 = vector.broadcast %c29_i32 : i32 to vector<8x64xi32>
      %241 = arith.cmpi eq, %33, %240 : vector<8x64xi32>
      %242 = vector.shape_cast %239 : vector<64xf32> to vector<1x64xf32>
      %243 = vector.broadcast %242 : vector<1x64xf32> to vector<8x64xf32>
      %244 = arith.select %241, %243, %237 : vector<8x64xi1>, vector<8x64xf32>
      %c30 = arith.constant 30 : index
      %c0_45 = arith.constant 0 : index
      %245 = vector.load %arg2[%c30, %c0_45] : memref<32x64xf32, #tpu.memory_space<vmem>>, vector<1x64xf32>
      %246 = vector.shape_cast %245 : vector<1x64xf32> to vector<64xf32>
      %c30_i32 = arith.constant 30 : i32
      %247 = vector.broadcast %c30_i32 : i32 to vector<8x64xi32>
      %248 = arith.cmpi eq, %33, %247 : vector<8x64xi32>
      %249 = vector.shape_cast %246 : vector<64xf32> to vector<1x64xf32>
      %250 = vector.broadcast %249 : vector<1x64xf32> to vector<8x64xf32>
      %251 = arith.select %248, %250, %244 : vector<8x64xi1>, vector<8x64xf32>
      %c0_46 = arith.constant 0 : index
      %c0_47 = arith.constant 0 : index
      %252 = vector.load %arg3[%c0_46, %c0_47] : memref<8x64xf32, #tpu.memory_space<vmem>>, vector<8x64xf32>
      tpu.vector_store %arg3[%c0_46, %c0_47], %251 {strides = array<i32>} : memref<8x64xf32, #tpu.memory_space<vmem>>, vector<8x64xf32>,
    } else {
    }
    return
  }
  func.func @transform_0(%arg0: i32, %arg1: i32) -> (i32, i32) {
    %c0_i32 = arith.constant 0 : i32
    %c0_i32_0 = arith.constant 0 : i32
    %c0_i32_1 = arith.constant 0 : i32
    return %c0_i32, %c0_i32_0 : i32, i32
  }
  func.func @transform_1(%arg0: i32, %arg1: i32) -> (i32, i32) {
    %c0_i32 = arith.constant 0 : i32
    return %arg0, %arg1 : i32, i32
  }
}

</mosaic_0001>

<llo_original>
// kernel: tpu_custom_call.1
$region0: #{tpu_custom_call.1}
  #allocation0 [shape = 'u32[]', space=smem, size = 0x4, offset = 0x4, fixed_abs, tag = 'smem constant byte address 0x4 - core index']
  #allocation1 [shape = 'u32[144,128]{1,0:T(1,128)}', space=vmem, size = 0x12000, scoped, tag = 'internal scratch']
  %s0 = inlined_call_operand.hbm [shape: f32[32,64], index: 0, kind: input, shape index: {}]
  %s1 = inlined_call_operand.hbm [shape: f32[8,64], index: 1, kind: output, shape index: {}]
  %s2 = sld [smem:[#allocation0]]
  $region30: #{tpu_custom_call.1} parent=0
    _
  %s4 = ssub.s32 1, %s2
  %s5 = scalar_select 0, %s4, %s2
  $region1: #{tpu_custom_call.1} parent=0
    #allocation2 [shape = 'u8[16384]{0}', space=vmem, size = 0x4000, scoped, tag = 'input window, operand 0, single buffered']
    #allocation3 [shape = 's32[1]{0}', space=sflag, size = 0x4, scoped, tag = 'scoped memory for tpu_custom_call.1']
    #allocation4 [shape = 's32[1]{0}', space=sflag, size = 0x4, scoped, tag = 'scoped memory for tpu_custom_call.1']
    #allocation5 [shape = 'u8[4096]{0}', space=vmem, size = 0x1000, scoped, tag = 'output window, operand 0, single buffered']
    %6 = vsyncpa [#allocation3], 0
    %7 = vsyncpa [#allocation4], 0
    // Predicated region
    $region2: #{tpu_custom_call.1} parent=1 // pred_check
      _
    $region3: #{tpu_custom_call.1} parent=1 // pred_check_branch
      %9 = sbr.rel (0) target = $region5
    $region4: #{tpu_custom_call.1} parent=1 // pred_region
      %s11 = ssub.s32 512, 512
      %12 = vsyncadd [#allocation3], %s11
      %s13 = sshll.u32 [#allocation2], 4
      %s14 = int_to_ptr.vmem [resolvable:$true] %s13
      %19 = dma.hbm_to_vmem [thread:$0]  %s0, 512, %s14, [#allocation3], 128, 128, 8
    $region5: #{tpu_custom_call.1} parent=1 // pred_fallthru
      _
    // Predicated region
    $region6: #{tpu_custom_call.1} parent=1 // pred_check
      _
    $region7: #{tpu_custom_call.1} parent=1 // pred_check_branch
      %21 = sbr.rel (0) target = $region9
    $region8: #{tpu_custom_call.1} parent=1 // pred_region
      %22 = dma.done [#allocation3], 512
    $region9: #{tpu_custom_call.1} parent=1 // pred_fallthru
      _
    %s23 = smul.u32 0, 8
    %s24 = smul.u32 0, 8
    %s25 = sadd.s32 %s23, 7
    %s26 = ssub.s32 %s24, %s25
    %s27 = sadd.s32 %s24, 7
    %s28 = ssub.s32 %s27, %s23
    %p29 = scmp.ge.s32.totalorder %s26, 15
    %p30 = scmp.le.s32.totalorder %s28, 4294967281
    %p31 = scmp.lt.s32.totalorder %s26, 15
    %p32 = pnand %p30, %p31
    %p33 = pneg %p32
    %p34 = por %p29, %p33
    %p35 = pneg %p34
    // Predicated region
    $region10: #{tpu_custom_call.1} parent=1 // pred_check
      %p36 = pneg %p29
    $region11: #{tpu_custom_call.1} parent=1 // pred_check_branch
      %38 = sbr.rel (%p36) target = $region13
    $region12: #{tpu_custom_call.1} parent=1 // pred_region
      %v39 = vld [vmem:[#allocation2 + $0x1e] sm:$0x1]
      %v40 = vlaneseq
      %v41 = vshrl.u32 %v40, 7
      %v42 = vsub.s32 0, %v41
      %v43 = vrot.slane %v39, %v42
      %vm44 = vcmask 523264
      %45 = vst.msk [vmem:[#allocation5] sm:$0xff] %vm44, %v43
    $region13: #{tpu_custom_call.1} parent=1 // pred_fallthru
      _
    // Predicated region
    $region14: #{tpu_custom_call.1} parent=1 // pred_check
      _
    $region15: #{tpu_custom_call.1} parent=1 // pred_check_branch
      %47 = sbr.rel (%p32) target = $region17
    $region16: #{tpu_custom_call.1} parent=1 // pred_region
      %v48 = vld [vmem:[#allocation2] sm:$0x1]
      %v49 = vlaneseq
      %v50 = vshrl.u32 %v49, 7
      %v51 = vsub.s32 0, %v50
      %v52 = vrot.slane %v48, %v51
      %vm53 = vcmask 523264
      %54 = vst.msk [vmem:[#allocation5] sm:$0xff] %vm53, %v52
    $region17: #{tpu_custom_call.1} parent=1 // pred_fallthru
      _
    // Predicated region
    $region18: #{tpu_custom_call.1} parent=1 // pred_check
      _
    $region19: #{tpu_custom_call.1} parent=1 // pred_check_branch
      %56 = sbr.rel (%p34) target = $region21
    $region20: #{tpu_custom_call.1} parent=1 // pred_region
      %v57 = vlaneseq
      %v58 = vshrl.u32 %v57, 7
      %v59 = vlaneseq
      %v60 = vand.u32 %v59, 127
      %v61 = vshra.s32 %v60, 3
      %s62 = ssub.s32 %s24, %s23
      %v63 = vstv %s62
      %v64 = vadd.s32 %v63, %v61
      %v65 = vsub.s32 %v64, %v58
      %vm66 = vcmp.gt.s32.totalorder %v65, 4294967281
      %v67 = vsel %vm66, %v65, 4294967281
      %vm68 = vcmp.lt.s32.totalorder %v67, 15
      %v69 = vsel %vm68, %v67, 15
      %v70 = vadd.s32 %v69, 15
      %v71 = vld [vmem:[#allocation2] sm:$0x1]
      %vm72 = vcmp.eq.s32.totalorder %v70, 0
      %v73 = vlaneseq
      %v74 = vshrl.u32 %v73, 7
      %v75 = vsub.s32 0, %v74
      %v76 = vrot.slane %v71, %v75
      %v77 = vsel %vm72, %v76, 0.0
      %v78 = vld [vmem:[#allocation2 + $0x1] sm:$0x1]
      %vm79 = vcmp.eq.s32.totalorder %v70, 1
      %v80 = vlaneseq
      %v81 = vshrl.u32 %v80, 7
      %v82 = vsub.s32 0, %v81
      %v83 = vrot.slane %v78, %v82
      %v84 = vsel %vm79, %v83, %v77
      %v85 = vld [vmem:[#allocation2 + $0x2] sm:$0x1]
      %vm86 = vcmp.eq.s32.totalorder %v70, 2
      %v87 = vlaneseq
      %v88 = vshrl.u32 %v87, 7
      %v89 = vsub.s32 0, %v88
      %v90 = vrot.slane %v85, %v89
      %v91 = vsel %vm86, %v90, %v84
      %v92 = vld [vmem:[#allocation2 + $0x3] sm:$0x1]
      %vm93 = vcmp.eq.s32.totalorder %v70, 3
      %v94 = vlaneseq
      %v95 = vshrl.u32 %v94, 7
      %v96 = vsub.s32 0, %v95
      %v97 = vrot.slane %v92, %v96
      %v98 = vsel %vm93, %v97, %v91
      %v99 = vld [vmem:[#allocation2 + $0x4] sm:$0x1]
      %vm100 = vcmp.eq.s32.totalorder %v70, 4
      %v101 = vlaneseq
      %v102 = vshrl.u32 %v101, 7
      %v103 = vsub.s32 0, %v102
      %v104 = vrot.slane %v99, %v103
      %v105 = vsel %vm100, %v104, %v98
      %v106 = vld [vmem:[#allocation2 + $0x5] sm:$0x1]
      %vm107 = vcmp.eq.s32.totalorder %v70, 5
      %v108 = vlaneseq
      %v109 = vshrl.u32 %v108, 7
      %v110 = vsub.s32 0, %v109
      %v111 = vrot.slane %v106, %v110
      %v112 = vsel %vm107, %v111, %v105
      %v113 = vld [vmem:[#allocation2 + $0x6] sm:$0x1]
      %vm114 = vcmp.eq.s32.totalorder %v70, 6
      %v115 = vlaneseq
      %v116 = vshrl.u32 %v115, 7
      %v117 = vsub.s32 0, %v116
      %v118 = vrot.slane %v113, %v117
      %v119 = vsel %vm114, %v118, %v112
      %v120 = vld [vmem:[#allocation2 + $0x7] sm:$0x1]
      %vm121 = vcmp.eq.s32.totalorder %v70, 7
      %v122 = vlaneseq
      %v123 = vshrl.u32 %v122, 7
      %v124 = vsub.s32 0, %v123
      %v125 = vrot.slane %v120, %v124
      %v126 = vsel %vm121, %v125, %v119
      %v127 = vld [vmem:[#allocation2 + $0x8] sm:$0x1]
      %vm128 = vcmp.eq.s32.totalorder %v70, 8
      %v129 = vlaneseq
      %v130 = vshrl.u32 %v129, 7
      %v131 = vsub.s32 0, %v130
      %v132 = vrot.slane %v127, %v131
      %v133 = vsel %vm128, %v132, %v126
      %v134 = vld [vmem:[#allocation2 + $0x9] sm:$0x1]
      %vm135 = vcmp.eq.s32.totalorder %v70, 9
      %v136 = vlaneseq
      %v137 = vshrl.u32 %v136, 7
      %v138 = vsub.s32 0, %v137
      %v139 = vrot.slane %v134, %v138
      %v140 = vsel %vm135, %v139, %v133
      %v141 = vld [vmem:[#allocation2 + $0xa] sm:$0x1]
      %vm142 = vcmp.eq.s32.totalorder %v70, 10
      %v143 = vlaneseq
      %v144 = vshrl.u32 %v143, 7
      %v145 = vsub.s32 0, %v144
      %v146 = vrot.slane %v141, %v145
      %v147 = vsel %vm142, %v146, %v140
      %v148 = vld [vmem:[#allocation2 + $0xb] sm:$0x1]
      %vm149 = vcmp.eq.s32.totalorder %v70, 11
      %v150 = vlaneseq
      %v151 = vshrl.u32 %v150, 7
      %v152 = vsub.s32 0, %v151
      %v153 = vrot.slane %v148, %v152
      %v154 = vsel %vm149, %v153, %v147
      %v155 = vld [vmem:[#allocation2 + $0xc] sm:$0x1]
      %vm156 = vcmp.eq.s32.totalorder %v70, 12
      %v157 = vlaneseq
      %v158 = vshrl.u32 %v157, 7
      %v159 = vsub.s32 0, %v158
      %v160 = vrot.slane %v155, %v159
      %v161 = vsel %vm156, %v160, %v154
      %v162 = vld [vmem:[#allocation2 + $0xd] sm:$0x1]
      %vm163 = vcmp.eq.s32.totalorder %v70, 13
      %v164 = vlaneseq
      %v165 = vshrl.u32 %v164, 7
      %v166 = vsub.s32 0, %v165
      %v167 = vrot.slane %v162, %v166
      %v168 = vsel %vm163, %v167, %v161
      %v169 = vld [vmem:[#allocation2 + $0xe] sm:$0x1]
      %vm170 = vcmp.eq.s32.totalorder %v70, 14
      %v171 = vlaneseq
      %v172 = vshrl.u32 %v171, 7
      %v173 = vsub.s32 0, %v172
      %v174 = vrot.slane %v169, %v173
      %v175 = vsel %vm170, %v174, %v168
      %v176 = vld [vmem:[#allocation2 + $0xf] sm:$0x1]
      %vm177 = vcmp.eq.s32.totalorder %v70, 15
      %v178 = vlaneseq
      %v179 = vshrl.u32 %v178, 7
      %v180 = vsub.s32 0, %v179
      %v181 = vrot.slane %v176, %v180
      %v182 = vsel %vm177, %v181, %v175
      %v183 = vld [vmem:[#allocation2 + $0x10] sm:$0x1]
      %vm184 = vcmp.eq.s32.totalorder %v70, 16
      %v185 = vlaneseq
      %v186 = vshrl.u32 %v185, 7
      %v187 = vsub.s32 0, %v186
      %v188 = vrot.slane %v183, %v187
      %v189 = vsel %vm184, %v188, %v182
      %v190 = vld [vmem:[#allocation2 + $0x11] sm:$0x1]
      %vm191 = vcmp.eq.s32.totalorder %v70, 17
      %v192 = vlaneseq
      %v193 = vshrl.u32 %v192, 7
      %v194 = vsub.s32 0, %v193
      %v195 = vrot.slane %v190, %v194
      %v196 = vsel %vm191, %v195, %v189
      %v197 = vld [vmem:[#allocation2 + $0x12] sm:$0x1]
      %vm198 = vcmp.eq.s32.totalorder %v70, 18
      %v199 = vlaneseq
      %v200 = vshrl.u32 %v199, 7
      %v201 = vsub.s32 0, %v200
      %v202 = vrot.slane %v197, %v201
      %v203 = vsel %vm198, %v202, %v196
      %v204 = vld [vmem:[#allocation2 + $0x13] sm:$0x1]
      %vm205 = vcmp.eq.s32.totalorder %v70, 19
      %v206 = vlaneseq
      %v207 = vshrl.u32 %v206, 7
      %v208 = vsub.s32 0, %v207
      %v209 = vrot.slane %v204, %v208
      %v210 = vsel %vm205, %v209, %v203
      %v211 = vld [vmem:[#allocation2 + $0x14] sm:$0x1]
      %vm212 = vcmp.eq.s32.totalorder %v70, 20
      %v213 = vlaneseq
      %v214 = vshrl.u32 %v213, 7
      %v215 = vsub.s32 0, %v214
      %v216 = vrot.slane %v211, %v215
      %v217 = vsel %vm212, %v216, %v210
      %v218 = vld [vmem:[#allocation2 + $0x15] sm:$0x1]
      %vm219 = vcmp.eq.s32.totalorder %v70, 21
      %v220 = vlaneseq
      %v221 = vshrl.u32 %v220, 7
      %v222 = vsub.s32 0, %v221
      %v223 = vrot.slane %v218, %v222
      %v224 = vsel %vm219, %v223, %v217
      %v225 = vld [vmem:[#allocation2 + $0x16] sm:$0x1]
      %vm226 = vcmp.eq.s32.totalorder %v70, 22
      %v227 = vlaneseq
      %v228 = vshrl.u32 %v227, 7
      %v229 = vsub.s32 0, %v228
      %v230 = vrot.slane %v225, %v229
      %v231 = vsel %vm226, %v230, %v224
      %v232 = vld [vmem:[#allocation2 + $0x17] sm:$0x1]
      %vm233 = vcmp.eq.s32.totalorder %v70, 23
      %v234 = vlaneseq
      %v235 = vshrl.u32 %v234, 7
      %v236 = vsub.s32 0, %v235
      %v237 = vrot.slane %v232, %v236
      %v238 = vsel %vm233, %v237, %v231
      %v239 = vld [vmem:[#allocation2 + $0x18] sm:$0x1]
      %vm240 = vcmp.eq.s32.totalorder %v70, 24
      %v241 = vlaneseq
      %v242 = vshrl.u32 %v241, 7
      %v243 = vsub.s32 0, %v242
      %v244 = vrot.slane %v239, %v243
      %v245 = vsel %vm240, %v244, %v238
      %v246 = vld [vmem:[#allocation2 + $0x19] sm:$0x1]
      %vm247 = vcmp.eq.s32.totalorder %v70, 25
      %v248 = vlaneseq
      %v249 = vshrl.u32 %v248, 7
      %v250 = vsub.s32 0, %v249
      %v251 = vrot.slane %v246, %v250
      %v252 = vsel %vm247, %v251, %v245
      %v253 = vld [vmem:[#allocation2 + $0x1a] sm:$0x1]
      %vm254 = vcmp.eq.s32.totalorder %v70, 26
      %v255 = vlaneseq
      %v256 = vshrl.u32 %v255, 7
      %v257 = vsub.s32 0, %v256
      %v258 = vrot.slane %v253, %v257
      %v259 = vsel %vm254, %v258, %v252
      %v260 = vld [vmem:[#allocation2 + $0x1b] sm:$0x1]
      %vm261 = vcmp.eq.s32.totalorder %v70, 27
      %v262 = vlaneseq
      %v263 = vshrl.u32 %v262, 7
      %v264 = vsub.s32 0, %v263
      %v265 = vrot.slane %v260, %v264
      %v266 = vsel %vm261, %v265, %v259
      %v267 = vld [vmem:[#allocation2 + $0x1c] sm:$0x1]
      %vm268 = vcmp.eq.s32.totalorder %v70, 28
      %v269 = vlaneseq
      %v270 = vshrl.u32 %v269, 7
      %v271 = vsub.s32 0, %v270
      %v272 = vrot.slane %v267, %v271
      %v273 = vsel %vm268, %v272, %v266
      %v274 = vld [vmem:[#allocation2 + $0x1d] sm:$0x1]
      %vm275 = vcmp.eq.s32.totalorder %v70, 29
      %v276 = vlaneseq
      %v277 = vshrl.u32 %v276, 7
      %v278 = vsub.s32 0, %v277
      %v279 = vrot.slane %v274, %v278
      %v280 = vsel %vm275, %v279, %v273
      %v281 = vld [vmem:[#allocation2 + $0x1e] sm:$0x1]
      %vm282 = vcmp.eq.s32.totalorder %v70, 30
      %v283 = vlaneseq
      %v284 = vshrl.u32 %v283, 7
      %v285 = vsub.s32 0, %v284
      %v286 = vrot.slane %v281, %v285
      %v287 = vsel %vm282, %v286, %v280
      %vm288 = vcmask 523264
      %289 = vst.msk [vmem:[#allocation5] sm:$0xff] %vm288, %v287
    $region21: #{tpu_custom_call.1} parent=1 // pred_fallthru
      _
    // Predicated region
    $region22: #{tpu_custom_call.1} parent=1 // pred_check
      _
    $region23: #{tpu_custom_call.1} parent=1 // pred_check_branch
      %291 = sbr.rel (0) target = $region25
    $region24: #{tpu_custom_call.1} parent=1 // pred_region
      %s293 = ssub.s32 128, 128
      %294 = vsyncadd [#allocation4], %s293
      %s296 = sshll.u32 [#allocation5], 4
      %s297 = int_to_ptr.vmem [resolvable:$true] %s296
      %299 = dma.vmem_to_hbm [thread:$0]  %s297, 128, %s1, [#allocation4]
    $region25: #{tpu_custom_call.1} parent=1 // pred_fallthru
      _
    // Predicated region
    $region26: #{tpu_custom_call.1} parent=1 // pred_check
      _
    $region27: #{tpu_custom_call.1} parent=1 // pred_check_branch
      %301 = sbr.rel (0) target = $region29
    $region28: #{tpu_custom_call.1} parent=1 // pred_region
      %302 = dma.done [#allocation4], 128
    $region29: #{tpu_custom_call.1} parent=1 // pred_fallthru
      _
    %303 = vsyncpa [#allocation3], 1
    %304 = vsyncpa [#allocation4], 1

</llo_original>
